<compile_context>
chip_gen: v7x
topology: tpu7x:2x2x1
jax: 0.10.0
libtpu: 0.0.40
codegen_flags: <defaults>
</compile_context>

<pallas_src>
import functools
import math

import jax
import jax.numpy as jnp
from jax import lax
from jax.experimental import pallas as pl
from jax.experimental.pallas import tpu as pltpu

LANE = 128  # TPU vreg lane width; the packed projection weight spans one lane group.


def _self_attention_kernel(x_ref, w_ref, b_ref, o_ref, *, kq_dim, output_dim):
    x = x_ref[...]                                   # [N, D]
    w = w_ref[...]                                   # [D, LANE] packed K | Q*scale | V

    # One fused MXU matmul produces all three projections inside one lane block.
    proj = jnp.dot(x, w, preferred_element_type=jnp.float32)          # [N, LANE]

    # Static lane-offset slices of the packed projection (cheap XLU rotates).
    k = proj[:, 0:kq_dim]                                              # [N, kq]
    q = proj[:, kq_dim:2 * kq_dim]                                     # [N, kq] (pre-scaled)
    v = proj[:, 2 * kq_dim:2 * kq_dim + output_dim] + b_ref[...]       # [N, out]

    # Scores = q @ k^T, contracting last axes directly (no explicit transpose).
    s = lax.dot_general(
        q, k,
        dimension_numbers=(((1,), (1,)), ((), ())),
        preferred_element_type=jnp.float32,
    )                                                                  # [N, N]

    # Numerically-stable softmax over the key axis — EXACT divide (correctness).
    m = jnp.max(s, axis=-1, keepdims=True)
    e = jnp.exp(s - m)
    p = e / jnp.sum(e, axis=-1, keepdims=True)

    # Attention-weighted values (bias already folded into v).
    o_ref[...] = jnp.dot(p, v, preferred_element_type=jnp.float32)     # [N, out]


def make_self_attention(w_key, w_query, w_value, b):
    """Packs weights once at init; returns a jitted forward(x) matching
    SelfAttention.forward (i.e. Attention(X, X))."""
    d, kq_dim = w_key.shape
    output_dim = w_value.shape[1]
    # TODO(synk): for 2*kq_dim + output_dim > 128, split across multiple lane groups.
    assert 2 * kq_dim + output_dim <= LANE
    scale = 1.0 / math.sqrt(float(kq_dim))

    # Packed [D, 128]: cols [0:kq)=W_key, [kq:2kq)=W_query*scale, [2kq:2kq+out)=W_value.
    w_packed = jnp.zeros((d, LANE), dtype=jnp.float32)
    w_packed = w_packed.at[:, 0:kq_dim].set(w_key.astype(jnp.float32))
    w_packed = w_packed.at[:, kq_dim:2 * kq_dim].set(w_query.astype(jnp.float32) * scale)
    w_packed = w_packed.at[:, 2 * kq_dim:2 * kq_dim + output_dim].set(
        w_value.astype(jnp.float32))
    b_row = b.reshape(1, output_dim).astype(jnp.float32)

    kernel = functools.partial(
        _self_attention_kernel, kq_dim=kq_dim, output_dim=output_dim)

    @jax.jit
    def forward(x):
        n, _ = x.shape
        cost = pl.CostEstimate(
            flops=2 * n * d * LANE + 2 * n * n * kq_dim + 2 * n * n * output_dim,
            transcendentals=n * n,
            bytes_accessed=4 * (x.size + w_packed.size + b_row.size + n * output_dim),
        )
        return pl.pallas_call(
            kernel,
            out_shape=jax.ShapeDtypeStruct((n, output_dim), jnp.float32),
            in_specs=[
                pl.BlockSpec(memory_space=pltpu.VMEM),  # x
                pl.BlockSpec(memory_space=pltpu.VMEM),  # packed weights (built once)
                pl.BlockSpec(memory_space=pltpu.VMEM),  # bias row
            ],
            out_specs=pl.BlockSpec(memory_space=pltpu.VMEM),
            cost_estimate=cost,
        )(x.astype(jnp.float32), w_packed, b_row)

    return forward


def _reference(x, w_key, w_query, w_value, b):
    k = x @ w_key
    q = x @ w_query
    v = x @ w_value + b
    y = q @ k.T / math.sqrt(w_key.shape[1])
    y = jax.nn.softmax(y, axis=1)
    return y @ v


if __name__ == "__main__":
    # Shapes implied by SelfAttention(input_dim, output_dim, kq_dim) on a 2-D X.
    N, INPUT_DIM, OUTPUT_DIM, KQ_DIM = 8, 32, 16, 8

    key = jax.random.PRNGKey(0)
    kx, kk, kq, kv = jax.random.split(key, 4)

    x = jax.random.normal(kx, (N, INPUT_DIM), dtype=jnp.float32)

    # Parameter init mirroring torch.randint(-1, 1, ...): values in {-1, 0}.
    w_key = jax.random.randint(kk, (INPUT_DIM, KQ_DIM), -1, 1).astype(jnp.float32)
    w_query = jax.random.randint(kq, (INPUT_DIM, KQ_DIM), -1, 1).astype(jnp.float32)
    w_value = jax.random.randint(kv, (INPUT_DIM, OUTPUT_DIM), -1, 1).astype(jnp.float32)
    b = jnp.zeros((OUTPUT_DIM,), dtype=jnp.float32)

    attn = make_self_attention(w_key, w_query, w_value, b)  # weight packing at init
    out = attn(x)
    jax.block_until_ready(out)

    ref = _reference(x, w_key, w_query, w_value, b)
    assert out.shape == (N, OUTPUT_DIM)
    assert jnp.allclose(out, ref, atol=1e-4, rtol=1e-4), "mismatch vs reference"

    print("KERNEL_OK")
</pallas_src>

<mosaic_0001>
module attributes {stable_mosaic.version = 11 : i64} {
  func.func @_self_attention_kernel(%arg0: memref<8x32xf32, #tpu.memory_space<vmem>>, %arg1: memref<32x128xf32, #tpu.memory_space<vmem>>, %arg2: memref<1x16xf32, #tpu.memory_space<vmem>>, %arg3: memref<8x16xf32, #tpu.memory_space<vmem>>) attributes {dimension_semantics = [], scalar_prefetch = 0 : i64, scratch_operands = 0 : i64, tpu.core_type = #tpu.core_type<tc>} {
    %c0 = arith.constant 0 : index
    %c0_0 = arith.constant 0 : index
    %0 = vector.load %arg0[%c0, %c0_0] : memref<8x32xf32, #tpu.memory_space<vmem>>, vector<8x32xf32>
    %c0_1 = arith.constant 0 : index
    %c0_2 = arith.constant 0 : index
    %1 = vector.load %arg1[%c0_1, %c0_2] : memref<32x128xf32, #tpu.memory_space<vmem>>, vector<32x128xf32>
    %cst = arith.constant dense<0.000000e+00> : vector<8x128xf32>
    %2 = tpu.matmul %0, %1, %cst {dimension_numbers = #tpu.dot_dimension_numbers<[1], [0], [0], [1], [0, 0, 1, 1], [], []>} : vector<8x32xf32>, vector<32x128xf32>, vector<8x128xf32> -> vector<8x128xf32>
    %3 = vector.extract_strided_slice %2 {offsets = [0, 0], sizes = [8, 8], strides = [1, 1]} : vector<8x128xf32> to vector<8x8xf32>
    %4 = vector.extract_strided_slice %2 {offsets = [0, 8], sizes = [8, 8], strides = [1, 1]} : vector<8x128xf32> to vector<8x8xf32>
    %5 = vector.extract_strided_slice %2 {offsets = [0, 16], sizes = [8, 16], strides = [1, 1]} : vector<8x128xf32> to vector<8x16xf32>
    %c0_3 = arith.constant 0 : index
    %c0_4 = arith.constant 0 : index
    %6 = vector.load %arg2[%c0_3, %c0_4] : memref<1x16xf32, #tpu.memory_space<vmem>>, vector<1x16xf32>
    %7 = vector.broadcast %6 : vector<1x16xf32> to vector<8x16xf32>
    %8 = arith.addf %5, %7 : vector<8x16xf32>
    %cst_5 = arith.constant dense<0.000000e+00> : vector<8x8xf32>
    %9 = tpu.matmul %4, %3, %cst_5 {dimension_numbers = #tpu.dot_dimension_numbers<[1], [1], [0], [0], [0, 0, 1, 0], [], []>} : vector<8x8xf32>, vector<8x8xf32>, vector<8x8xf32> -> vector<8x8xf32>
    %cst_6 = arith.constant dense<0xFF800000> : vector<8xf32>
    %10 = vector.multi_reduction <maximumf>, %9, %cst_6 [1] : vector<8x8xf32> to vector<8xf32>
    %11 = vector.shape_cast %10 : vector<8xf32> to vector<8x1xf32>
    %12 = vector.broadcast %11 : vector<8x1xf32> to vector<8x8xf32>
    %13 = arith.subf %9, %12 : vector<8x8xf32>
    %14 = math.exp %13 : vector<8x8xf32>
    %cst_7 = arith.constant dense<0.000000e+00> : vector<8xf32>
    %15 = vector.multi_reduction <add>, %14, %cst_7 [1] : vector<8x8xf32> to vector<8xf32>
    %16 = vector.shape_cast %15 : vector<8xf32> to vector<8x1xf32>
    %17 = vector.broadcast %16 : vector<8x1xf32> to vector<8x8xf32>
    %18 = arith.divf %14, %17 : vector<8x8xf32>
    %cst_8 = arith.constant dense<0.000000e+00> : vector<8x16xf32>
    %19 = tpu.matmul %18, %8, %cst_8 {dimension_numbers = #tpu.dot_dimension_numbers<[1], [0], [0], [1], [0, 0, 1, 1], [], []>} : vector<8x8xf32>, vector<8x16xf32>, vector<8x16xf32> -> vector<8x16xf32>
    %c0_9 = arith.constant 0 : index
    %c0_10 = arith.constant 0 : index
    %20 = vector.load %arg3[%c0_9, %c0_10] : memref<8x16xf32, #tpu.memory_space<vmem>>, vector<8x16xf32>
    tpu.vector_store %arg3[%c0_9, %c0_10], %19 {strides = array<i32>} : memref<8x16xf32, #tpu.memory_space<vmem>>, vector<8x16xf32>,
    return
  }
}

</mosaic_0001>

<llo_original>
// kernel: forward.1
$region0: #{forward.1}
  #allocation0 [shape = 'u32[]', space=smem, size = 0x4, offset = 0x4, fixed_abs, tag = 'smem constant byte address 0x4 - core index']
  #allocation1 [shape = 'u32[144,128]{1,0:T(1,128)}', space=vmem, size = 0x12000, scoped, tag = 'internal scratch']
  %s0 = inlined_call_operand.hbm [shape: f32[8,32], index: 0, kind: input, shape index: {}]
  %s1 = inlined_call_operand.hbm [shape: f32[32,128], index: 1, kind: input, shape index: {}]
  %s2 = inlined_call_operand.vmem [shape: f32[1,16], index: 2, kind: input, shape index: {}]
  %s3 = inlined_call_operand.hbm [shape: f32[8,16], index: 3, kind: output, shape index: {}]
  %s4 = sld [smem:[#allocation0]]
  $region30: #{forward.1} parent=0
    _
  %s6 = ssub.s32 1, %s4
  %s7 = scalar_select 0, %s6, %s4
  $region1: #{forward.1} parent=0
    #allocation2 [shape = 'u8[4096]{0}', space=vmem, size = 0x1000, scoped, tag = 'input window, operand 0, single buffered']
    #allocation3 [shape = 's32[1]{0}', space=sflag, size = 0x4, scoped, tag = 'scoped memory for forward.1']
    #allocation4 [shape = 's32[1]{0}', space=sflag, size = 0x4, scoped, tag = 'scoped memory for forward.1']
    #allocation5 [shape = 'u8[16384]{0}', space=vmem, size = 0x4000, scoped, tag = 'input window, operand 1, single buffered']
    #allocation6 [shape = 's32[1]{0}', space=sflag, size = 0x4, scoped, tag = 'scoped memory for forward.1']
    #allocation7 [shape = 'u8[4096]{0}', space=vmem, size = 0x1000, scoped, tag = 'output window, operand 0, single buffered']
    %8 = vsyncpa [#allocation3], 0
    %9 = vsyncpa [#allocation6], 0
    %10 = vsyncpa [#allocation4], 0
    // Predicated region
    $region2: #{forward.1} parent=1 // pred_check
      _
    $region3: #{forward.1} parent=1 // pred_check_branch
      %12 = sbr.rel (0) target = $region5
    $region4: #{forward.1} parent=1 // pred_region
      %s14 = ssub.s32 128, 128
      %15 = vsyncadd [#allocation3], %s14
      %s17 = sshll.u32 [#allocation2], 4
      %s18 = int_to_ptr.vmem [resolvable:$true] %s17
      %20 = dma.hbm_to_vmem [thread:$0]  %s0, 128, %s18, [#allocation3]
    $region5: #{forward.1} parent=1 // pred_fallthru
      _
    // Predicated region
    $region6: #{forward.1} parent=1 // pred_check
      _
    $region7: #{forward.1} parent=1 // pred_check_branch
      %22 = sbr.rel (0) target = $region9
    $region8: #{forward.1} parent=1 // pred_region
      %s24 = ssub.s32 512, 512
      %25 = vsyncadd [#allocation6], %s24
      %s26 = sshll.u32 [#allocation5], 4
      %s27 = int_to_ptr.vmem [resolvable:$true] %s26
      %32 = dma.hbm_to_vmem [thread:$0]  %s1, 512, %s27, [#allocation6], 128, 128, 8
    $region9: #{forward.1} parent=1 // pred_fallthru
      _
    // Predicated region
    $region10: #{forward.1} parent=1 // pred_check
      _
    $region11: #{forward.1} parent=1 // pred_check_branch
      %34 = sbr.rel (0) target = $region13
    $region12: #{forward.1} parent=1 // pred_region
      _
    $region13: #{forward.1} parent=1 // pred_fallthru
      _
    // Predicated region
    $region14: #{forward.1} parent=1 // pred_check
      _
    $region15: #{forward.1} parent=1 // pred_check_branch
      %36 = sbr.rel (0) target = $region17
    $region16: #{forward.1} parent=1 // pred_region
      %37 = dma.done [#allocation3], 128
    $region17: #{forward.1} parent=1 // pred_fallthru
      _
    // Predicated region
    $region18: #{forward.1} parent=1 // pred_check
      _
    $region19: #{forward.1} parent=1 // pred_check_branch
      %39 = sbr.rel (0) target = $region21
    $region20: #{forward.1} parent=1 // pred_region
      %40 = dma.done [#allocation6], 512
    $region21: #{forward.1} parent=1 // pred_fallthru
      _
    %v41 = vld [vmem:[#allocation2] sm:$0xff]
    %v42 = vld [vmem:[#allocation5] sm:$0xff]
    %v43 = vld [vmem:[#allocation5 + $0x8] sm:$0xff]
    %v44 = vld [vmem:[#allocation5 + $0x10] sm:$0xff]
    %v45 = vld [vmem:[#allocation5 + $0x18] sm:$0xff]
    %vm46 = vcmask 261120
    %v48 = vsel %vm46, %v41, 0
    %50 = vmatprep.subr.mxu0 0.0
    %51 = vmatpush1.msra.mxu0 %v42
    %52 = vmatprep.subr.mxu0 0.0
    %53 = vmatpush1.msra.mxu0 %v43
    %54 = vmatprep.subr.mxu0 0.0
    %55 = vmatpush1.msra.mxu0 %v44
    %56 = vmatprep.subr.mxu0 0.0
    %57 = vmatpush1.msra.mxu0 %v45
    %58 = vmatprep.subr.mxu0 0.0
    %59 = vmatpush1.msra.mxu0 0.0
    %60 = vmatprep.subr.mxu0 0.0
    %61 = vmatpush1.msra.mxu0 0.0
    %62 = vmatprep.subr.mxu0 0.0
    %63 = vmatpush1.msra.mxu0 0.0
    %64 = vmatprep.subr.mxu0 0.0
    %65 = vmatpush1.msra.mxu0 0.0
    %66 = vmatprep.subr.mxu0 0.0
    %67 = vmatpush1.msra.mxu0 0.0
    %68 = vmatprep.subr.mxu0 0.0
    %69 = vmatpush1.msra.mxu0 0.0
    %70 = vmatprep.subr.mxu0 0.0
    %71 = vmatpush1.msra.mxu0 0.0
    %72 = vmatprep.subr.mxu0 0.0
    %73 = vmatpush1.msra.mxu0 0.0
    %74 = vmatprep.subr.mxu0 0.0
    %75 = vmatpush1.msra.mxu0 0.0
    %76 = vmatprep.subr.mxu0 0.0
    %77 = vmatpush1.msra.mxu0 0.0
    %78 = vmatprep.subr.mxu0 0.0
    %79 = vmatpush1.msra.mxu0 0.0
    %80 = vmatprep.subr.mxu0 0.0
    %81 = vmatpush1.msra.mxu0 0.0
    %82 = vmatprep.subr.mxu0 0.0
    %83 = vmatpush1.msra.mxu0 0.0
    %84 = vmatprep.subr.mxu0 0.0
    %85 = vmatpush1.msra.mxu0 0.0
    %86 = vmatprep.subr.mxu0 0.0
    %87 = vmatpush1.msra.mxu0 0.0
    %88 = vmatprep.subr.mxu0 0.0
    %89 = vmatpush1.msra.mxu0 0.0
    %90 = vmatprep.subr.mxu0 0.0
    %91 = vmatpush1.msra.mxu0 0.0
    %92 = vmatprep.subr.mxu0 0.0
    %93 = vmatpush1.msra.mxu0 0.0
    %94 = vmatprep.subr.mxu0 0.0
    %95 = vmatpush1.msra.mxu0 0.0
    %96 = vmatprep.subr.mxu0 0.0
    %97 = vmatpush1.msra.mxu0 0.0
    %98 = vmatprep.subr.mxu0 0.0
    %99 = vmatpush1.msra.mxu0 0.0
    %100 = vmatprep.subr.mxu0 0.0
    %101 = vmatpush1.msra.mxu0 0.0
    %102 = vmatprep.subr.mxu0 0.0
    %103 = vmatpush1.msra.mxu0 0.0
    %104 = vmatprep.subr.mxu0 0.0
    %105 = vmatpush1.msra.mxu0 0.0
    %106 = vmatprep.subr.mxu0 0.0
    %107 = vmatpush1.msra.mxu0 0.0
    %108 = vmatprep.subr.mxu0 0.0
    %109 = vmatpush1.msra.mxu0 0.0
    %110 = vmatprep.subr.mxu0 0.0
    %111 = vmatpush1.msra.mxu0 0.0
    %112 = vmatprep.subr.mxu0 0.0
    %113 = vmatpush1.msra.mxu0 0.0
    %114 = vmatprep.mubr.f32.mxu0 0.0
    %115 = vmatmul.mubr.f32.gmra.mrb[0].mxu0 %v48
    %v116 = vpop.f32.mrb[0].mxu0
    %v117 = vadd.f32 0.0, %v116
    %v118 = vpop.f32.mrb[0].mxu0
    %119 = vdwg.mxu0
    %v120 = vld [vmem:[%s2] sm:$0x1]
    %v122 = vlaneseq
    %v123 = vshrl.u32 %v122, 7
    %v124 = vsub.s32 0, %v123
    %v125 = vrot.slane %v120, %v124
    %126 = vrot.lane.b32.xlu0 %v125, 16
    %v127 = vpop.permute.xlu0 %126
    %v129 = vadd.f32 %v117, %v127
    %131 = vrot.lane.b32.xlu0 %v117, 120
    %v132 = vpop.permute.xlu0 %131
    %vm133 = vcmask 64512
    %v134 = vsel %vm133, %v132, 0
    %v136 = vsel %vm133, %v117, 0
    %138 = vmatprep.subr.mxu0 0.0
    %139 = vmatpush1.xpose.msra.mxu0 %v136
    %140 = vmatprep.subr.mxu0 0.0
    %141 = vmatpush1.xpose.msra.mxu0 0.0
    %142 = vmatprep.subr.mxu0 0.0
    %143 = vmatpush1.xpose.msra.mxu0 0.0
    %144 = vmatprep.subr.mxu0 0.0
    %145 = vmatpush1.xpose.msra.mxu0 0.0
    %146 = vmatprep.subr.mxu0 0.0
    %147 = vmatpush1.xpose.msra.mxu0 0.0
    %148 = vmatprep.subr.mxu0 0.0
    %149 = vmatpush1.xpose.msra.mxu0 0.0
    %150 = vmatprep.subr.mxu0 0.0
    %151 = vmatpush1.xpose.msra.mxu0 0.0
    %152 = vmatprep.subr.mxu0 0.0
    %153 = vmatpush1.xpose.msra.mxu0 0.0
    %154 = vmatprep.subr.mxu0 0.0
    %155 = vmatpush1.xpose.msra.mxu0 0.0
    %156 = vmatprep.subr.mxu0 0.0
    %157 = vmatpush1.xpose.msra.mxu0 0.0
    %158 = vmatprep.subr.mxu0 0.0
    %159 = vmatpush1.xpose.msra.mxu0 0.0
    %160 = vmatprep.subr.mxu0 0.0
    %161 = vmatpush1.xpose.msra.mxu0 0.0
    %162 = vmatprep.subr.mxu0 0.0
    %163 = vmatpush1.xpose.msra.mxu0 0.0
    %164 = vmatprep.subr.mxu0 0.0
    %165 = vmatpush1.xpose.msra.mxu0 0.0
    %166 = vmatprep.subr.mxu0 0.0
    %167 = vmatpush1.xpose.msra.mxu0 0.0
    %168 = vmatprep.subr.mxu0 0.0
    %169 = vmatpush1.xpose.msra.mxu0 0.0
    %170 = vmatprep.subr.mxu0 0.0
    %171 = vmatpush1.xpose.msra.mxu0 0.0
    %172 = vmatprep.subr.mxu0 0.0
    %173 = vmatpush1.xpose.msra.mxu0 0.0
    %174 = vmatprep.subr.mxu0 0.0
    %175 = vmatpush1.xpose.msra.mxu0 0.0
    %176 = vmatprep.subr.mxu0 0.0
    %177 = vmatpush1.xpose.msra.mxu0 0.0
    %178 = vmatprep.subr.mxu0 0.0
    %179 = vmatpush1.xpose.msra.mxu0 0.0
    %180 = vmatprep.subr.mxu0 0.0
    %181 = vmatpush1.xpose.msra.mxu0 0.0
    %182 = vmatprep.subr.mxu0 0.0
    %183 = vmatpush1.xpose.msra.mxu0 0.0
    %184 = vmatprep.subr.mxu0 0.0
    %185 = vmatpush1.xpose.msra.mxu0 0.0
    %186 = vmatprep.subr.mxu0 0.0
    %187 = vmatpush1.xpose.msra.mxu0 0.0
    %188 = vmatprep.subr.mxu0 0.0
    %189 = vmatpush1.xpose.msra.mxu0 0.0
    %190 = vmatprep.subr.mxu0 0.0
    %191 = vmatpush1.xpose.msra.mxu0 0.0
    %192 = vmatprep.subr.mxu0 0.0
    %193 = vmatpush1.xpose.msra.mxu0 0.0
    %194 = vmatprep.subr.mxu0 0.0
    %195 = vmatpush1.xpose.msra.mxu0 0.0
    %196 = vmatprep.subr.mxu0 0.0
    %197 = vmatpush1.xpose.msra.mxu0 0.0
    %198 = vmatprep.subr.mxu0 0.0
    %199 = vmatpush1.xpose.msra.mxu0 0.0
    %200 = vmatprep.subr.mxu0 0.0
    %201 = vmatpush1.xpose.msra.mxu0 0.0
    %202 = vmatprep.mubr.f32.mxu0 0.0
    %203 = vmatmul.mubr.f32.gmra.mrb[0].mxu0 %v134
    %v204 = vpop.f32.mrb[0].mxu0
    %v205 = vadd.f32 0.0, %v204
    %v206 = vpop.f32.mrb[0].mxu0
    %207 = vdwg.mxu0
    %v208 = vsel %vm133, %v205, -inf
    %209 = vmax.xlane.f32.xlu0 %v208
    %v210 = vpop.xlane.xlu0 %209
    %v211 = vsub.f32 %v205, %v210
    %v212 = vmul.f32 %v211, 1.442695
    %v213 = vpow.pop %v212
    %v214 = vsel %vm133, %v213, 0.0
    %215 = vadd.xlane.f32.xlu0 %v214
    %v216 = vpop.xlane.xlu0 %215
    %v217 = vrcp.pop %v216
    %v218 = vmul.f32 %v213, %v217
    %220 = vrot.lane.b32.xlu0 %v129, 112
    %v221 = vpop.permute.xlu0 %220
    %v224 = vsel %vm133, %v218, 0
    %226 = vmatprep.subr.mxu0 0.0
    %227 = vmatpush1.msra.mxu0 %v221
    %228 = vmatprep.subr.mxu0 0.0
    %229 = vmatpush1.msra.mxu0 0.0
    %230 = vmatprep.subr.mxu0 0.0
    %231 = vmatpush1.msra.mxu0 0.0
    %232 = vmatprep.subr.mxu0 0.0
    %233 = vmatpush1.msra.mxu0 0.0
    %234 = vmatprep.subr.mxu0 0.0
    %235 = vmatpush1.msra.mxu0 0.0
    %236 = vmatprep.subr.mxu0 0.0
    %237 = vmatpush1.msra.mxu0 0.0
    %238 = vmatprep.subr.mxu0 0.0
    %239 = vmatpush1.msra.mxu0 0.0
    %240 = vmatprep.subr.mxu0 0.0
    %241 = vmatpush1.msra.mxu0 0.0
    %242 = vmatprep.subr.mxu0 0.0
    %243 = vmatpush1.msra.mxu0 0.0
    %244 = vmatprep.subr.mxu0 0.0
    %245 = vmatpush1.msra.mxu0 0.0
    %246 = vmatprep.subr.mxu0 0.0
    %247 = vmatpush1.msra.mxu0 0.0
    %248 = vmatprep.subr.mxu0 0.0
    %249 = vmatpush1.msra.mxu0 0.0
    %250 = vmatprep.subr.mxu0 0.0
    %251 = vmatpush1.msra.mxu0 0.0
    %252 = vmatprep.subr.mxu0 0.0
    %253 = vmatpush1.msra.mxu0 0.0
    %254 = vmatprep.subr.mxu0 0.0
    %255 = vmatpush1.msra.mxu0 0.0
    %256 = vmatprep.subr.mxu0 0.0
    %257 = vmatpush1.msra.mxu0 0.0
    %258 = vmatprep.subr.mxu0 0.0
    %259 = vmatpush1.msra.mxu0 0.0
    %260 = vmatprep.subr.mxu0 0.0
    %261 = vmatpush1.msra.mxu0 0.0
    %262 = vmatprep.subr.mxu0 0.0
    %263 = vmatpush1.msra.mxu0 0.0
    %264 = vmatprep.subr.mxu0 0.0
    %265 = vmatpush1.msra.mxu0 0.0
    %266 = vmatprep.subr.mxu0 0.0
    %267 = vmatpush1.msra.mxu0 0.0
    %268 = vmatprep.subr.mxu0 0.0
    %269 = vmatpush1.msra.mxu0 0.0
    %270 = vmatprep.subr.mxu0 0.0
    %271 = vmatpush1.msra.mxu0 0.0
    %272 = vmatprep.subr.mxu0 0.0
    %273 = vmatpush1.msra.mxu0 0.0
    %274 = vmatprep.subr.mxu0 0.0
    %275 = vmatpush1.msra.mxu0 0.0
    %276 = vmatprep.subr.mxu0 0.0
    %277 = vmatpush1.msra.mxu0 0.0
    %278 = vmatprep.subr.mxu0 0.0
    %279 = vmatpush1.msra.mxu0 0.0
    %280 = vmatprep.subr.mxu0 0.0
    %281 = vmatpush1.msra.mxu0 0.0
    %282 = vmatprep.subr.mxu0 0.0
    %283 = vmatpush1.msra.mxu0 0.0
    %284 = vmatprep.subr.mxu0 0.0
    %285 = vmatpush1.msra.mxu0 0.0
    %286 = vmatprep.subr.mxu0 0.0
    %287 = vmatpush1.msra.mxu0 0.0
    %288 = vmatprep.subr.mxu0 0.0
    %289 = vmatpush1.msra.mxu0 0.0
    %290 = vmatprep.mubr.f32.mxu0 0.0
    %291 = vmatmul.mubr.f32.gmra.mrb[0].mxu0 %v224
    %v292 = vpop.f32.mrb[0].mxu0
    %v293 = vadd.f32 0.0, %v292
    %v294 = vpop.f32.mrb[0].mxu0
    %295 = vdwg.mxu0
    %vm296 = vcmask 130048
    %297 = vst.msk [vmem:[#allocation7] sm:$0xff] %vm296, %v293
    // Predicated region
    $region22: #{forward.1} parent=1 // pred_check
      _
    $region23: #{forward.1} parent=1 // pred_check_branch
      %299 = sbr.rel (0) target = $region25
    $region24: #{forward.1} parent=1 // pred_region
      %s301 = ssub.s32 128, 128
      %302 = vsyncadd [#allocation4], %s301
      %s304 = sshll.u32 [#allocation7], 4
      %s305 = int_to_ptr.vmem [resolvable:$true] %s304
      %307 = dma.vmem_to_hbm [thread:$0]  %s305, 128, %s3, [#allocation4]
    $region25: #{forward.1} parent=1 // pred_fallthru
      _
    // Predicated region
    $region26: #{forward.1} parent=1 // pred_check
      _
    $region27: #{forward.1} parent=1 // pred_check_branch
      %309 = sbr.rel (0) target = $region29
    $region28: #{forward.1} parent=1 // pred_region
      %310 = dma.done [#allocation4], 128
    $region29: #{forward.1} parent=1 // pred_fallthru
      _
    %311 = vsyncpa [#allocation3], 1
    %312 = vsyncpa [#allocation6], 1
    %313 = vsyncpa [#allocation4], 1

</llo_original>
